<compile_context>
chip_gen: v7x
topology: tpu7x:2x2x1
jax: 0.10.0
libtpu: 0.0.40
codegen_flags: <defaults>
</compile_context>

<pallas_src>
import functools
import math

import jax
import jax.numpy as jnp
from jax.experimental import pallas as pl
from jax.experimental.pallas import tpu as pltpu


# ----------------------------- Pallas kernel ---------------------------------
def encoder_kernel(x_ref, wc_ref, wl_ref, b_ref, out_ref):
    # x_ref  : (KF, Lt)     im2col columns (conv/pool taps stacked on sublanes), compute dtype
    # wc_ref : (Chid, KF)   fused (conv [+ pool]) weight, spectrally normalized
    # wl_ref : (Chid, Chid) spectrally-normalized linear weight
    # b_ref  : (Chid, 1)    fused bias  (Wl @ b_conv + b_lin), f32
    # out_ref: (Chid, Lt)   lane-dense output slab (time/batch on the lane axis)
    cdt = wl_ref.dtype
    conv = jnp.dot(wc_ref[...], x_ref[...],
                   preferred_element_type=jnp.float32)            # (Chid, Lt) f32
    y = jnp.dot(wl_ref[...], conv.astype(cdt),
                preferred_element_type=jnp.float32)                # (Chid, Lt) f32
    out_ref[...] = (y + b_ref[...]).astype(out_ref.dtype)


# ----------------------------- glue / wrapper --------------------------------
def spectral_sigma(w2d, n_iter=30):
    """Largest singular value via power iteration (deterministic, fori_loop)."""
    m = w2d.shape[0]
    u0 = jnp.full((m,), 1.0 / math.sqrt(m), w2d.dtype)

    def body(_, u):
        v = w2d.T @ u
        v = v / (jnp.linalg.norm(v) + 1e-12)
        u = w2d @ v
        u = u / (jnp.linalg.norm(u) + 1e-12)
        return u

    u = jax.lax.fori_loop(0, n_iter, body, u0)
    v = w2d.T @ u
    v = v / (jnp.linalg.norm(v) + 1e-12)
    return u @ (w2d @ v)


def init_params(key, c_in, c_hid):
    k1, k2, k3, k4 = jax.random.split(key, 4)
    # conv: init_weights -> normal(0, 0.01); bias: PyTorch default uniform(-b, b)
    w_conv = 0.01 * jax.random.normal(k1, (c_hid, c_in, 3), jnp.float32)
    bound_c = 1.0 / math.sqrt(c_in * 3)
    b_conv = jax.random.uniform(k2, (c_hid,), jnp.float32, -bound_c, bound_c)
    # linear: PyTorch default
    bound_l = 1.0 / math.sqrt(c_hid)
    w_lin = jax.random.uniform(k3, (c_hid, c_hid), jnp.float32, -bound_l, bound_l)
    b_lin = jax.random.uniform(k4, (c_hid,), jnp.float32, -bound_l, bound_l)
    return dict(w_conv=w_conv, b_conv=b_conv, w_lin=w_lin, b_lin=b_lin)


def _pick_lane_tile(total_lanes, chid):
    """Lane-axis tile: multiple of 128, ~2 MiB of f32 output per step, >=2 steps if possible."""
    if total_lanes <= 256:
        return total_lanes                                   # single full-width block
    target = max(128, ((2 * 1024 * 1024) // (chid * 4)) // 128 * 128)
    lt = min(total_lanes, target)
    lt = max(128, (lt // 128) * 128)
    if pl.cdiv(total_lanes, lt) < 2:                         # give both v7x TensorCores work
        half = (total_lanes + 1) // 2
        lt = max(128, ((half + 127) // 128) * 128)
    return lt


@functools.partial(jax.jit, static_argnames=("compress", "compute_dtype", "out_dtype"))
def encoder_forward(x, params, compress=True,
                    compute_dtype=jnp.bfloat16, out_dtype=jnp.float32):
    """x: [B, c_in, T] (PyTorch NCL). Returns [B, c_hid, ceil(T/2)] if compress else [B, c_hid, T]."""
    B, Cin, T = x.shape
    Chid = params["w_conv"].shape[0]
    Tout = (-(-T // 2)) if compress else T

    # --- spectral norm (parameter rescaling, plain-JAX glue) ---
    wc = params["w_conv"]                                            # (Chid, Cin, 3)
    wc_sn = wc / spectral_sigma(wc.reshape(Chid, Cin * 3))
    wl_sn = params["w_lin"] / spectral_sigma(params["w_lin"])
    w0, w1, w2 = wc_sn[:, :, 0], wc_sn[:, :, 1], wc_sn[:, :, 2]      # each (Chid, Cin)

    xf = x.astype(jnp.float32)
    if compress:
        # Pool folded into the conv matmul: pooled[p] = 0.5*(conv[2p] + conv[2p+1])
        #   = 0.5*w0@x[2p-1] + 0.5*(w0+w1)@x[2p] + 0.5*(w1+w2)@x[2p+1] + 0.5*w2@x[2p+2]
        wc_f = 0.5 * jnp.concatenate([w0, w0 + w1, w1 + w2, w2], axis=1)   # (Chid, 4*Cin)
        KF = 4 * Cin
        pad_r = 2 if (T % 2) else 1
        x_pad = jnp.pad(xf, ((0, 0), (0, 0), (1, pad_r)))                  # (B, Cin, T+1+pad_r)
        taps = [x_pad[:, :, j:j + 2 * Tout:2] for j in range(4)]           # each (B, Cin, Tout)
        x_unf = jnp.concatenate(taps, axis=1)                              # (B, 4*Cin, Tout)
        if T % 2:
            # ceil_mode tail window (single element): taps (2*x[T-2], 0, 2*x[T-1], -2*x[T-1])
            # contract with wc_f to exactly conv[T-1]; handled here so the kernel stays uniform.
            xm2 = x_pad[:, :, T - 1]      # x[T-2] (0 when T == 1)
            xm1 = x_pad[:, :, T]          # x[T-1]
            tail = jnp.concatenate(
                [2.0 * xm2, jnp.zeros_like(xm2), 2.0 * xm1, -2.0 * xm1], axis=1)
            x_unf = x_unf.at[:, :, Tout - 1].set(tail)
    else:
        wc_f = jnp.concatenate([w0, w1, w2], axis=1)                       # (Chid, 3*Cin)
        KF = 3 * Cin
        x_pad = jnp.pad(xf, ((0, 0), (0, 0), (1, 1)))
        taps = [x_pad[:, :, j:j + T] for j in range(3)]
        x_unf = jnp.concatenate(taps, axis=1)                              # (B, 3*Cin, T)

    # Flatten batch onto the lane (time) axis: (KF, B*Tout), column index = b*Tout + t.
    x_unf_T = jnp.transpose(x_unf, (1, 0, 2)).reshape(KF, B * Tout).astype(compute_dtype)

    # Fused bias: y^T = Wl @ pooled^T + (Wl @ b_conv + b_lin)[:, None]
    b_fused = (wl_sn @ params["b_conv"] + params["b_lin"]).reshape(Chid, 1).astype(jnp.float32)

    L = B * Tout
    Lt = _pick_lane_tile(L, Chid)
    grid = (pl.cdiv(L, Lt),)

    # VMEM budget from the actual double-buffered working set (v7x: 64 MiB/TC -> cap at 24 MiB).
    in_it = jnp.dtype(compute_dtype).itemsize
    out_it = jnp.dtype(out_dtype).itemsize
    work = (2 * KF * Lt * in_it                 # double-buffered input block
            + 2 * Chid * Lt * out_it            # double-buffered output block
            + Chid * Lt * 4                     # f32 conv intermediate inside the kernel
            + 2 * (Chid * KF + Chid * Chid) * in_it + 2 * Chid * 4)
    vmem_limit = int(min(24 * 1024 * 1024, max(4 * 1024 * 1024, 2 * work)))

    out_flat = pl.pallas_call(
        encoder_kernel,
        out_shape=jax.ShapeDtypeStruct((Chid, L), out_dtype),
        grid_spec=pltpu.PrefetchScalarGridSpec(
            num_scalar_prefetch=0,
            grid=grid,
            in_specs=[
                pl.BlockSpec((KF, Lt), lambda i: (0, i)),
                pl.BlockSpec((Chid, KF), lambda i: (0, 0)),
                pl.BlockSpec((Chid, Chid), lambda i: (0, 0)),
                pl.BlockSpec((Chid, 1), lambda i: (0, 0)),
            ],
            out_specs=pl.BlockSpec((Chid, Lt), lambda i: (0, i)),
        ),
        compiler_params=pltpu.CompilerParams(
            dimension_semantics=("parallel",),
            vmem_limit_bytes=vmem_limit,
        ),
    )(x_unf_T, wc_f.astype(compute_dtype), wl_sn.astype(compute_dtype), b_fused)

    # (Chid, B*Tout) -> (B, Chid, Tout): leading-dim transpose, minor (time) dim preserved.
    return jnp.transpose(out_flat.reshape(Chid, B, Tout), (1, 0, 2))


# ----------------------------- pure-JAX reference ----------------------------
def encoder_reference(x, params, compress=True):
    B, Cin, T = x.shape
    Chid = params["w_conv"].shape[0]
    wc_sn = params["w_conv"] / spectral_sigma(params["w_conv"].reshape(Chid, Cin * 3))
    wl_sn = params["w_lin"] / spectral_sigma(params["w_lin"])

    y = jax.lax.conv_general_dilated(
        x.astype(jnp.float32), wc_sn, window_strides=(1,), padding=((1, 1),),
        dimension_numbers=("NCH", "OIH", "NCH"))
    y = y + params["b_conv"][None, :, None]
    if compress:
        Tf = T // 2
        head = 0.5 * (y[:, :, 0:2 * Tf:2] + y[:, :, 1:2 * Tf:2])
        y = jnp.concatenate([head, y[:, :, 2 * Tf:]], axis=-1) if (T % 2) else head
    z = jnp.swapaxes(y, 1, 2) @ wl_sn.T + params["b_lin"]
    return jnp.swapaxes(z, 1, 2)


# ----------------------------------- main -------------------------------------
if __name__ == "__main__":
    key = jax.random.PRNGKey(0)
    B, c_in, c_hid = 2, 4, 32

    kx, kp = jax.random.split(key)
    params = init_params(kp, c_in, c_hid)

    # 1) default path: compress=True, even T, bf16 matmul inputs + bf16 output store
    T = 16
    x = jax.random.normal(kx, (B, c_in, T), jnp.float32)
    out = jax.block_until_ready(
        encoder_forward(x, params, compress=True, out_dtype=jnp.bfloat16))
    ref = encoder_reference(x, params, compress=True)
    assert out.shape == (B, c_hid, (T + 1) // 2), out.shape
    err = float(jnp.max(jnp.abs(out.astype(jnp.float32) - ref)))
    assert jnp.allclose(out.astype(jnp.float32), ref, atol=5e-2, rtol=5e-2), err

    # 2) odd T exercises the ceil_mode tail column; f32 compute for a tight check
    T2 = 15
    x2 = jax.random.normal(kx, (B, c_in, T2), jnp.float32)
    out2 = jax.block_until_ready(
        encoder_forward(x2, params, compress=True, compute_dtype=jnp.float32))
    ref2 = encoder_reference(x2, params, compress=True)
    assert out2.shape == (B, c_hid, (T2 + 1) // 2), out2.shape
    assert jnp.allclose(out2, ref2, atol=1e-3, rtol=1e-3), float(jnp.max(jnp.abs(out2 - ref2)))

    # 3) compress=False path, f32 compute
    out3 = jax.block_until_ready(
        encoder_forward(x, params, compress=False, compute_dtype=jnp.float32))
    ref3 = encoder_reference(x, params, compress=False)
    assert out3.shape == (B, c_hid, T), out3.shape
    assert jnp.allclose(out3, ref3, atol=1e-3, rtol=1e-3), float(jnp.max(jnp.abs(out3 - ref3)))

    print("KERNEL_OK")
</pallas_src>

<mosaic_0001>
module attributes {stable_mosaic.version = 11 : i64} {
  func.func @encoder_kernel(%arg0: i32, %arg1: memref<16x16xbf16, #tpu.memory_space<vmem>>, %arg2: memref<32x16xbf16, #tpu.memory_space<vmem>>, %arg3: memref<32x32xbf16, #tpu.memory_space<vmem>>, %arg4: memref<32x1xf32, #tpu.memory_space<vmem>>, %arg5: memref<32x16xbf16, #tpu.memory_space<vmem>>) attributes {dimension_semantics = [#tpu.dimension_semantics<parallel>], iteration_bounds = array<i64: 1>, scalar_prefetch = 0 : i64, scratch_operands = 0 : i64, tpu.core_type = #tpu.core_type<tc>, window_params = [{transform_indices = @transform_0, window_bounds = array<i64: 16, 16>}, {pipeline_mode = #tpu.pipeline_mode<synchronous>, transform_indices = @transform_1, window_bounds = array<i64: 32, 16>}, {pipeline_mode = #tpu.pipeline_mode<synchronous>, transform_indices = @transform_2, window_bounds = array<i64: 32, 32>}, {pipeline_mode = #tpu.pipeline_mode<synchronous>, transform_indices = @transform_3, window_bounds = array<i64: 32, 1>}, {transform_indices = @transform_4, window_bounds = array<i64: 32, 16>}]} {
    %c0 = arith.constant 0 : index
    %c0_0 = arith.constant 0 : index
    %0 = vector.load %arg2[%c0, %c0_0] : memref<32x16xbf16, #tpu.memory_space<vmem>>, vector<32x16xbf16>
    %c0_1 = arith.constant 0 : index
    %c0_2 = arith.constant 0 : index
    %1 = vector.load %arg1[%c0_1, %c0_2] : memref<16x16xbf16, #tpu.memory_space<vmem>>, vector<16x16xbf16>
    %cst = arith.constant dense<0.000000e+00> : vector<32x16xf32>
    %2 = tpu.matmul %0, %1, %cst {dimension_numbers = #tpu.dot_dimension_numbers<[1], [0], [0], [1], [0, 0, 1, 1], [], []>} : vector<32x16xbf16>, vector<16x16xbf16>, vector<32x16xf32> -> vector<32x16xf32>
    %c0_3 = arith.constant 0 : index
    %c0_4 = arith.constant 0 : index
    %3 = vector.load %arg3[%c0_3, %c0_4] : memref<32x32xbf16, #tpu.memory_space<vmem>>, vector<32x32xbf16>
    %4 = arith.truncf %2 : vector<32x16xf32> to vector<32x16xbf16>
    %cst_5 = arith.constant dense<0.000000e+00> : vector<32x16xf32>
    %5 = tpu.matmul %3, %4, %cst_5 {dimension_numbers = #tpu.dot_dimension_numbers<[1], [0], [0], [1], [0, 0, 1, 1], [], []>} : vector<32x32xbf16>, vector<32x16xbf16>, vector<32x16xf32> -> vector<32x16xf32>
    %c0_6 = arith.constant 0 : index
    %c0_7 = arith.constant 0 : index
    %6 = vector.load %arg4[%c0_6, %c0_7] : memref<32x1xf32, #tpu.memory_space<vmem>>, vector<32x1xf32>
    %7 = vector.broadcast %6 : vector<32x1xf32> to vector<32x16xf32>
    %8 = arith.addf %5, %7 : vector<32x16xf32>
    %9 = arith.truncf %8 : vector<32x16xf32> to vector<32x16xbf16>
    %c0_8 = arith.constant 0 : index
    %c0_9 = arith.constant 0 : index
    %10 = vector.load %arg5[%c0_8, %c0_9] : memref<32x16xbf16, #tpu.memory_space<vmem>>, vector<32x16xbf16>
    tpu.vector_store %arg5[%c0_8, %c0_9], %9 {strides = array<i32>} : memref<32x16xbf16, #tpu.memory_space<vmem>>, vector<32x16xbf16>,
    return
  }
  func.func @transform_0(%arg0: i32) -> (i32, i32) {
    %c0_i32 = arith.constant 0 : i32
    %c0_i32_0 = arith.constant 0 : i32
    return %c0_i32, %arg0 : i32, i32
  }
  func.func @transform_1(%arg0: i32) -> (i32, i32) {
    %c0_i32 = arith.constant 0 : i32
    %c0_i32_0 = arith.constant 0 : i32
    %c0_i32_1 = arith.constant 0 : i32
    return %c0_i32, %c0_i32_0 : i32, i32
  }
  func.func @transform_2(%arg0: i32) -> (i32, i32) {
    %c0_i32 = arith.constant 0 : i32
    %c0_i32_0 = arith.constant 0 : i32
    %c0_i32_1 = arith.constant 0 : i32
    return %c0_i32, %c0_i32_0 : i32, i32
  }
  func.func @transform_3(%arg0: i32) -> (i32, i32) {
    %c0_i32 = arith.constant 0 : i32
    %c0_i32_0 = arith.constant 0 : i32
    %c0_i32_1 = arith.constant 0 : i32
    return %c0_i32, %c0_i32_0 : i32, i32
  }
  func.func @transform_4(%arg0: i32) -> (i32, i32) {
    %c0_i32 = arith.constant 0 : i32
    %c0_i32_0 = arith.constant 0 : i32
    return %c0_i32, %arg0 : i32, i32
  }
}

</mosaic_0001>

<llo_original>
// kernel: custom-call
$region0: #{custom-call}
  %s0 = inlined_call_operand.vmem [shape: f32[32], index: 0, kind: output, shape index: {}]

// kernel: encoder_forward.1
$region0: #{encoder_forward.1}
  #allocation0 [shape = 'u32[]', space=smem, size = 0x4, offset = 0x4, fixed_abs, tag = 'smem constant byte address 0x4 - core index']
  #allocation1 [shape = 'u32[144,128]{1,0:T(1,128)}', space=vmem, size = 0x12000, scoped, tag = 'internal scratch']
  %s0 = inlined_call_operand.vmem [shape: bf16[16,16], index: 0, kind: input, shape index: {}]
  %s1 = inlined_call_operand.vmem [shape: bf16[32,16], index: 1, kind: input, shape index: {}]
  %s2 = inlined_call_operand.vmem [shape: bf16[32,32], index: 2, kind: input, shape index: {}]
  %s3 = inlined_call_operand.vmem [shape: f32[32,1], index: 3, kind: input, shape index: {}]
  %s4 = inlined_call_operand.vmem [shape: bf16[32,16], index: 4, kind: output, shape index: {}]
  %s5 = sld [smem:[#allocation0]]
  $region26: #{encoder_forward.1} parent=0
    _
  %s7 = ssub.s32 1, %s5
  %s8 = scalar_select 0, %s7, %s5
  // Predicated region
  $region2: #{encoder_forward.1} parent=0 // pred_check
    _
  $region3: #{encoder_forward.1} parent=0 // pred_check_branch
    %10 = sbr.rel (0) target = $region5
  $region4: #{encoder_forward.1} parent=0 // pred_region
    _
  $region5: #{encoder_forward.1} parent=0 // pred_fallthru
    _
  // Predicated region
  $region6: #{encoder_forward.1} parent=0 // pred_check
    _
  $region7: #{encoder_forward.1} parent=0 // pred_check_branch
    %12 = sbr.rel (0) target = $region9
  $region8: #{encoder_forward.1} parent=0 // pred_region
    _
  $region9: #{encoder_forward.1} parent=0 // pred_fallthru
    _
  // Predicated region
  $region10: #{encoder_forward.1} parent=0 // pred_check
    _
  $region11: #{encoder_forward.1} parent=0 // pred_check_branch
    %14 = sbr.rel (0) target = $region13
  $region12: #{encoder_forward.1} parent=0 // pred_region
    _
  $region13: #{encoder_forward.1} parent=0 // pred_fallthru
    _
  // Predicated region
  $region14: #{encoder_forward.1} parent=0 // pred_check
    _
  $region15: #{encoder_forward.1} parent=0 // pred_check_branch
    %16 = sbr.rel (0) target = $region17
  $region16: #{encoder_forward.1} parent=0 // pred_region
    _
  $region17: #{encoder_forward.1} parent=0 // pred_fallthru
    _
  %v18 = vld [vmem:[%s1] sm:$0xf]
  %v19 = vld [vmem:[%s1 + $0x4] sm:$0xf]
  %v20 = vld [vmem:[%s1 + $0x8] sm:$0xf]
  %v21 = vld [vmem:[%s1 + $0xc] sm:$0xf]
  %v22 = vld [vmem:[%s0] sm:$0xf]
  %v23 = vld [vmem:[%s0 + $0x4] sm:$0xf]
  %v28 = vunpack.c.l.b16 %v18
  %v29 = vunpack.c.l.b16 %v19
  %v30 = vunpack.c.l.b16 %v20
  %v31 = vunpack.c.l.b16 %v21
  %v32 = vpack.c.b16 %v29, %v28
  %v33 = vpack.c.b16 %v31, %v30
  %v36 = vunpack.c.l.b16 %v22
  %v37 = vunpack.c.l.b16 %v23
  %v38 = vpack.c.b16 %v37, %v36
  %vm40 = vcmask 130048
  %v42 = vsel %vm40, %v32, 0
  %v45 = vsel %vm40, %v33, 0
  %47 = vmatprep.subr.bf16.mxu0 0
  %48 = vmatpush1.bf16.msra.mxu0 %v38
  %49 = vmatprep.subr.bf16.mxu0 0
  %50 = vmatpush1.bf16.msra.mxu0 0
  %51 = vmatprep.subr.bf16.mxu0 0
  %52 = vmatpush1.bf16.msra.mxu0 0
  %53 = vmatprep.subr.bf16.mxu0 0
  %54 = vmatpush1.bf16.msra.mxu0 0
  %55 = vmatprep.subr.bf16.mxu0 0
  %56 = vmatpush1.bf16.msra.mxu0 0
  %57 = vmatprep.subr.bf16.mxu0 0
  %58 = vmatpush1.bf16.msra.mxu0 0
  %59 = vmatprep.subr.bf16.mxu0 0
  %60 = vmatpush1.bf16.msra.mxu0 0
  %61 = vmatprep.subr.bf16.mxu0 0
  %62 = vmatpush1.bf16.msra.mxu0 0
  %63 = vmatprep.subr.bf16.mxu0 0
  %64 = vmatpush1.bf16.msra.mxu0 0
  %65 = vmatprep.subr.bf16.mxu0 0
  %66 = vmatpush1.bf16.msra.mxu0 0
  %67 = vmatprep.subr.bf16.mxu0 0
  %68 = vmatpush1.bf16.msra.mxu0 0
  %69 = vmatprep.subr.bf16.mxu0 0
  %70 = vmatpush1.bf16.msra.mxu0 0
  %71 = vmatprep.subr.bf16.mxu0 0
  %72 = vmatpush1.bf16.msra.mxu0 0
  %73 = vmatprep.subr.bf16.mxu0 0
  %74 = vmatpush1.bf16.msra.mxu0 0
  %75 = vmatprep.subr.bf16.mxu0 0
  %76 = vmatpush1.bf16.msra.mxu0 0
  %77 = vmatprep.subr.bf16.mxu0 0
  %78 = vmatpush1.bf16.msra.mxu0 0
  %79 = vmatprep.mubr.bf16.mxu0 0
  %80 = vmatmul.mubr.bf16.gmra.mrb[0].mxu0 %v42
  %v81 = vpop.f32.mrb[0].mxu0
  %v82 = vadd.f32 0.0, %v81
  %v83 = vpop.f32.mrb[0].mxu0
  %v84 = vpop.f32.mrb[0].mxu0
  %v85 = vadd.f32 0.0, %v84
  %v86 = vpop.f32.mrb[0].mxu0
  %87 = vmatprep.mubr.bf16.mxu0 0
  %88 = vmatmul.mubr.bf16.gmra.mrb[0].mxu0 %v45
  %v89 = vpop.f32.mrb[0].mxu0
  %v90 = vadd.f32 0.0, %v89
  %v91 = vpop.f32.mrb[0].mxu0
  %v92 = vpop.f32.mrb[0].mxu0
  %v93 = vadd.f32 0.0, %v92
  %v94 = vpop.f32.mrb[0].mxu0
  %95 = vdwg.mxu0
  %v96 = vld [vmem:[%s2] sm:$0xf]
  %v97 = vld [vmem:[%s2 + $0x4] sm:$0xf]
  %v98 = vld [vmem:[%s2 + $0x8] sm:$0xf]
  %v99 = vld [vmem:[%s2 + $0xc] sm:$0xf]
  %v100 = vpack.c.bf16 %v85, %v82
  %v101 = vpack.c.bf16 %v93, %v90
  %v102 = vld [vmem:[%s3] sm:$0xff]
  %v103 = vld [vmem:[%s3 + $0x8] sm:$0xff]
  %v104 = vld [vmem:[%s3 + $0x10] sm:$0xff]
  %v105 = vld [vmem:[%s3 + $0x18] sm:$0xff]
  %107 = vset.pattern.permute.xlu0 0
  %108 = vperm.xlu0 %107, %v102
  %v109 = vpop.permute.xlu0 %108
  %112 = vset.pattern.permute.xlu0 0
  %113 = vperm.xlu0 %112, %v103
  %v114 = vpop.permute.xlu0 %113
  %117 = vset.pattern.permute.xlu0 0
  %118 = vperm.xlu0 %117, %v104
  %v119 = vpop.permute.xlu0 %118
  %122 = vset.pattern.permute.xlu0 0
  %123 = vperm.xlu0 %122, %v105
  %v124 = vpop.permute.xlu0 %123
  %v130 = vunpack.c.l.b16 %v96
  %v131 = vunpack.c.l.b16 %v97
  %v132 = vunpack.c.l.b16 %v98
  %v133 = vunpack.c.l.b16 %v99
  %v134 = vpack.c.b16 %v131, %v130
  %v135 = vpack.c.b16 %v133, %v132
  %vm136 = vcmask 261120
  %v138 = vsel %vm136, %v134, 0
  %v141 = vsel %vm136, %v135, 0
  %143 = vmatprep.subr.bf16.mxu0 0
  %144 = vmatpush1.bf16.msra.mxu0 %v100
  %145 = vmatprep.subr.bf16.mxu0 0
  %146 = vmatpush1.bf16.msra.mxu0 %v101
  %147 = vmatprep.subr.bf16.mxu0 0
  %148 = vmatpush1.bf16.msra.mxu0 0
  %149 = vmatprep.subr.bf16.mxu0 0
  %150 = vmatpush1.bf16.msra.mxu0 0
  %151 = vmatprep.subr.bf16.mxu0 0
  %152 = vmatpush1.bf16.msra.mxu0 0
  %153 = vmatprep.subr.bf16.mxu0 0
  %154 = vmatpush1.bf16.msra.mxu0 0
  %155 = vmatprep.subr.bf16.mxu0 0
  %156 = vmatpush1.bf16.msra.mxu0 0
  %157 = vmatprep.subr.bf16.mxu0 0
  %158 = vmatpush1.bf16.msra.mxu0 0
  %159 = vmatprep.subr.bf16.mxu0 0
  %160 = vmatpush1.bf16.msra.mxu0 0
  %161 = vmatprep.subr.bf16.mxu0 0
  %162 = vmatpush1.bf16.msra.mxu0 0
  %163 = vmatprep.subr.bf16.mxu0 0
  %164 = vmatpush1.bf16.msra.mxu0 0
  %165 = vmatprep.subr.bf16.mxu0 0
  %166 = vmatpush1.bf16.msra.mxu0 0
  %167 = vmatprep.subr.bf16.mxu0 0
  %168 = vmatpush1.bf16.msra.mxu0 0
  %169 = vmatprep.subr.bf16.mxu0 0
  %170 = vmatpush1.bf16.msra.mxu0 0
  %171 = vmatprep.subr.bf16.mxu0 0
  %172 = vmatpush1.bf16.msra.mxu0 0
  %173 = vmatprep.subr.bf16.mxu0 0
  %174 = vmatpush1.bf16.msra.mxu0 0
  %175 = vmatprep.mubr.bf16.mxu0 0
  %176 = vmatmul.mubr.bf16.gmra.mrb[0].mxu0 %v138
  %v177 = vpop.f32.mrb[0].mxu0
  %v178 = vadd.f32 %v109, %v177
  %v179 = vpop.f32.mrb[0].mxu0
  %v180 = vpop.f32.mrb[0].mxu0
  %v181 = vadd.f32 %v114, %v180
  %v182 = vpop.f32.mrb[0].mxu0
  %183 = vmatprep.mubr.bf16.mxu0 0
  %184 = vmatmul.mubr.bf16.gmra.mrb[0].mxu0 %v141
  %v185 = vpop.f32.mrb[0].mxu0
  %v186 = vadd.f32 %v119, %v185
  %v187 = vpop.f32.mrb[0].mxu0
  %v188 = vpop.f32.mrb[0].mxu0
  %v189 = vadd.f32 %v124, %v188
  %v190 = vpop.f32.mrb[0].mxu0
  %191 = vdwg.mxu0
  %v192 = vpack.c.bf16 %v181, %v178
  %v193 = vpack.c.bf16 %v189, %v186
  %v196 = vunpack.c.l.b16 %v192
  %v197 = vunpack.c.h.b16 %v192
  %v198 = vunpack.c.l.b16 %v193
  %v199 = vunpack.c.h.b16 %v193
  %v200 = vpack.c.b16 %v196, %v196
  %v201 = vpack.c.b16 %v197, %v197
  %v202 = vpack.c.b16 %v198, %v198
  %v203 = vpack.c.b16 %v199, %v199
  %vm208 = vcmask 125952
  %209 = vst.msk [vmem:[%s4] sm:$0xf] %vm208, %v200
  %210 = vst.msk [vmem:[%s4 + $0x4] sm:$0xf] %vm208, %v201
  %211 = vst.msk [vmem:[%s4 + $0x8] sm:$0xf] %vm208, %v202
  %212 = vst.msk [vmem:[%s4 + $0xc] sm:$0xf] %vm208, %v203
  // Predicated region
  $region18: #{encoder_forward.1} parent=0 // pred_check
    _
  $region19: #{encoder_forward.1} parent=0 // pred_check_branch
    %214 = sbr.rel (0) target = $region21
  $region20: #{encoder_forward.1} parent=0 // pred_region
    _
  $region21: #{encoder_forward.1} parent=0 // pred_fallthru
    _
  // Predicated region
  $region22: #{encoder_forward.1} parent=0 // pred_check
    _
  $region23: #{encoder_forward.1} parent=0 // pred_check_branch
    %216 = sbr.rel (0) target = $region25
  $region24: #{encoder_forward.1} parent=0 // pred_region
    _
  $region25: #{encoder_forward.1} parent=0 // pred_fallthru
    _

</llo_original>
